<compile_context>
chip_gen: v7x
topology: tpu7x:2x2x1
jax: 0.10.0
libtpu: 0.0.40
codegen_flags: <defaults>
</compile_context>

<pallas_src>
import functools

import jax
import jax.numpy as jnp
from jax.experimental import pallas as pl
from jax.experimental.pallas import tpu as pltpu


def _round_up(x, m):
    return ((x + m - 1) // m) * m


def _vmem_budget_bytes():
    """~85% of this generation's per-core VMEM (fallback: 54 MiB, v7x-safe)."""
    try:
        cap = int(pltpu.get_tpu_info().vmem_capacity_bytes)
    except Exception:
        cap = 64 * 1024 * 1024
    return int(cap * 0.85)


# ---------------------------------------------------------------------------
# Kernels
# ---------------------------------------------------------------------------
def fnn_resident_kernel(x_ref, w1_ref, b1_ref, w2_ref, b2_ref, o_ref, *, mxu_dtype):
    """Whole W1/W2 resident in VMEM; one batch tile per grid step."""
    # fc1 on the MXU, f32 accumulation; bias folded into the accumulator init.
    h = b1_ref[...] + jnp.dot(
        x_ref[...].astype(mxu_dtype), w1_ref[...],
        preferred_element_type=jnp.float32,
    )
    h = jnp.maximum(h, 0.0)                       # f32 ReLU epilogue (VPU)
    y = b2_ref[...] + jnp.dot(
        h.astype(mxu_dtype), w2_ref[...],
        preferred_element_type=jnp.float32,
    )
    o_ref[...] = y.astype(o_ref.dtype)            # lane-dense (>=128) store


def fnn_hid_tiled_kernel(x_ref, w1_ref, b1_ref, w2_ref, b2_ref, o_ref, acc_ref,
                         *, mxu_dtype):
    """Hidden dim streamed in blocks (for weights too big for VMEM, e.g. v7x).

    Exact decomposition: relu/bias apply per hidden column, so
      y = sum_k relu(x @ W1[:, k] + b1[k]) @ W2[k, :] + b2.
    """
    k = pl.program_id(1)

    @pl.when(k == 0)
    def _():
        acc_ref[...] = jnp.broadcast_to(b2_ref[...], acc_ref.shape)

    h = jnp.maximum(
        b1_ref[...] + jnp.dot(x_ref[...].astype(mxu_dtype), w1_ref[...],
                              preferred_element_type=jnp.float32),
        0.0)
    acc_ref[...] += jnp.dot(h.astype(mxu_dtype), w2_ref[...],
                            preferred_element_type=jnp.float32)

    @pl.when(k == pl.num_programs(1) - 1)
    def _():
        o_ref[...] = acc_ref[...].astype(o_ref.dtype)


# ---------------------------------------------------------------------------
# Host-side wrappers
# ---------------------------------------------------------------------------
def prepare_params(w1, b1, w2, b2, *, mxu_dtype=jnp.bfloat16):
    """Pad weights/biases to lane multiples and cast ONCE (cache the result)."""
    in_f, hid = w1.shape
    out_f = w2.shape[1]
    in_p = _round_up(in_f, 128)
    hid_p = _round_up(hid, 128)
    out_p = _round_up(out_f, 128)
    w1p = jnp.pad(w1.astype(mxu_dtype), ((0, in_p - in_f), (0, hid_p - hid)))
    b1p = jnp.pad(b1.reshape(1, -1).astype(jnp.float32), ((0, 0), (0, hid_p - hid)))
    w2p = jnp.pad(w2.astype(mxu_dtype), ((0, hid_p - hid), (0, out_p - out_f)))
    b2p = jnp.pad(b2.reshape(1, -1).astype(jnp.float32), ((0, 0), (0, out_p - out_f)))
    return {"w1": w1p, "b1": b1p, "w2": w2p, "b2": b2p,
            "in_features": in_f, "out_features": out_f}


def fnn_forward(x, params, *, tile_b=None, trim_output=True, force_hid_tiling=False):
    """Fused MLP forward: relu(x @ W1 + b1) @ W2 + b2 (params from prepare_params)."""
    w1p, b1p, w2p, b2p = params["w1"], params["b1"], params["w2"], params["b2"]
    in_f, out_f = params["in_features"], params["out_features"]
    mxu_dtype = w1p.dtype
    in_p, hid_p = w1p.shape
    out_p = w2p.shape[1]
    batch = x.shape[0]
    out_dtype = jnp.float32 if x.dtype == jnp.float32 else x.dtype

    elt = jnp.dtype(mxu_dtype).itemsize
    out_elt = jnp.dtype(out_dtype).itemsize
    sublane = 16 if elt < 4 else 8               # bf16 packs (16,128) per vreg

    # Lane-pad the activations only (the K contraction needs real zeros).
    xp = x.astype(mxu_dtype)
    if in_p != in_f:
        xp = jnp.pad(xp, ((0, 0), (0, in_p - in_f)))

    budget = _vmem_budget_bytes()

    def _pick_tb(fixed_bytes, per_row_bytes):
        avail = budget - fixed_bytes
        if avail < per_row_bytes * sublane:
            return None
        tb = min(1024, avail // per_row_bytes)
        tb = (tb // sublane) * sublane
        tb = min(tb, _round_up(batch, sublane))
        if batch >= 2 * sublane:                 # >=2 tiles so v7x uses both TCs
            tb = min(tb, _round_up(pl.cdiv(batch, 2), sublane))
        return max(tb, sublane)

    cost = pl.CostEstimate(
        flops=2 * batch * (in_p * hid_p + hid_p * out_p),
        transcendentals=0,
        bytes_accessed=(xp.size * elt + w1p.size * elt + w2p.size * elt
                        + (b1p.size + b2p.size) * 4 + batch * out_p * out_elt),
    )

    # Resident-weight path sizing (weights single-buffered, activations 2x).
    bias_bytes = (hid_p + out_p) * 4
    w_bytes_res = (in_p * hid_p + hid_p * out_p) * elt + bias_bytes
    per_row_res = 2 * in_p * elt + 2 * out_p * out_elt + (hid_p + out_p) * 4
    tb_res = _pick_tb(w_bytes_res, per_row_res)
    use_resident = (tb_res is not None) and not force_hid_tiling

    if use_resident:
        tb = tb_res if tile_b is None else max(sublane, _round_up(tile_b, sublane))
        grid = (pl.cdiv(batch, tb),)

        def _call(single_buffer_weights):
            wkw = ({"pipeline_mode": pl.Buffered(1)} if single_buffer_weights else {})
            return pl.pallas_call(
                functools.partial(fnn_resident_kernel, mxu_dtype=mxu_dtype),
                out_shape=jax.ShapeDtypeStruct((batch, out_p), out_dtype),
                grid=grid,
                in_specs=[
                    pl.BlockSpec((tb, in_p), lambda i: (i, 0)),          # streamed x
                    pl.BlockSpec((in_p, hid_p), lambda i: (0, 0), **wkw),  # resident
                    pl.BlockSpec((1, hid_p), lambda i: (0, 0), **wkw),
                    pl.BlockSpec((hid_p, out_p), lambda i: (0, 0), **wkw),
                    pl.BlockSpec((1, out_p), lambda i: (0, 0), **wkw),
                ],
                out_specs=pl.BlockSpec((tb, out_p), lambda i: (i, 0)),
                compiler_params=pltpu.CompilerParams(
                    dimension_semantics=("parallel",),
                    vmem_limit_bytes=budget,
                ),
                cost_estimate=cost,
            )(xp, w1p, b1p, w2p, b2p)

        try:
            out_padded = _call(True)             # single-buffered invariant weights
        except Exception:
            out_padded = _call(False)            # fallback: default double-buffering
    else:
        # Hidden-dim tiled path: stream W1 column-blocks / W2 row-blocks.
        th, tb = None, None
        for cand_th in (512, 256, 128):
            cand_th = min(cand_th, hid_p)
            if hid_p % cand_th != 0:
                continue
            w_bytes_k = (2 * (in_p * cand_th + cand_th * out_p) * elt
                         + 2 * (cand_th + out_p) * 4)
            per_row_k = (2 * in_p * elt + 2 * out_p * out_elt
                         + (cand_th + 2 * out_p) * 4)
            cand_tb = _pick_tb(w_bytes_k, per_row_k)
            if cand_tb is not None:
                th, tb = cand_th, cand_tb
                break
        if th is None:
            th, tb = 128, sublane                # last resort; may spill but runs
        if tile_b is not None:
            tb = max(sublane, _round_up(tile_b, sublane))
        grid = (pl.cdiv(batch, tb), hid_p // th)

        out_padded = pl.pallas_call(
            functools.partial(fnn_hid_tiled_kernel, mxu_dtype=mxu_dtype),
            out_shape=jax.ShapeDtypeStruct((batch, out_p), out_dtype),
            grid=grid,
            in_specs=[
                pl.BlockSpec((tb, in_p), lambda i, k: (i, 0)),
                pl.BlockSpec((in_p, th), lambda i, k: (0, k)),
                pl.BlockSpec((1, th), lambda i, k: (0, k)),
                pl.BlockSpec((th, out_p), lambda i, k: (k, 0)),
                pl.BlockSpec((1, out_p), lambda i, k: (0, 0)),
            ],
            out_specs=pl.BlockSpec((tb, out_p), lambda i, k: (i, 0)),
            scratch_shapes=[pltpu.VMEM((tb, out_p), jnp.float32)],
            compiler_params=pltpu.CompilerParams(
                dimension_semantics=("parallel", "arbitrary"),
                vmem_limit_bytes=budget,
            ),
            cost_estimate=cost,
        )(xp, w1p, b1p, w2p, b2p)

    if trim_output and out_p != out_f:
        return out_padded[:, :out_f]
    return out_padded


def init_params(key, input_size, hidden_size, output_size):
    """Deterministic init mimicking nn.Linear (uniform in +/- 1/sqrt(fan_in))."""
    k1, k2, k3, k4 = jax.random.split(key, 4)
    lim1 = 1.0 / jnp.sqrt(jnp.float32(input_size))
    lim2 = 1.0 / jnp.sqrt(jnp.float32(hidden_size))
    # Stored as (in, out) == transpose of torch's (out, in) weight layout.
    w1 = jax.random.uniform(k1, (input_size, hidden_size), jnp.float32, -lim1, lim1)
    b1 = jax.random.uniform(k2, (1, hidden_size), jnp.float32, -lim1, lim1)
    w2 = jax.random.uniform(k3, (hidden_size, output_size), jnp.float32, -lim2, lim2)
    b2 = jax.random.uniform(k4, (1, output_size), jnp.float32, -lim2, lim2)
    return w1, b1, w2, b2


if __name__ == "__main__":
    input_size = 8
    hidden_size = 32
    output_size = 2
    batch = 2

    key = jax.random.PRNGKey(0)
    kx, kp = jax.random.split(key)
    x = jax.random.normal(kx, (batch, input_size), jnp.float32)
    w1, b1, w2, b2 = init_params(kp, input_size, hidden_size, output_size)

    ref = jnp.maximum(x @ w1 + b1, 0.0) @ w2 + b2

    # Default path: bf16 MXU inputs, f32 accumulation + epilogue.
    params_bf16 = prepare_params(w1, b1, w2, b2, mxu_dtype=jnp.bfloat16)
    out_bf16 = fnn_forward(x, params_bf16)
    jax.block_until_ready(out_bf16)
    assert out_bf16.shape == (batch, output_size)
    assert jnp.allclose(out_bf16, ref, atol=5e-2, rtol=5e-2)

    # f32 MXU path (tight tolerance vs reference).
    params_f32 = prepare_params(w1, b1, w2, b2, mxu_dtype=jnp.float32)
    out_f32 = fnn_forward(x, params_f32)
    jax.block_until_ready(out_f32)
    assert out_f32.shape == (batch, output_size)
    assert jnp.allclose(out_f32, ref, atol=1e-5, rtol=1e-5)

    # Exercise the hidden-dim-tiled (large-hidden / v7x) path for correctness.
    out_tiled = fnn_forward(x, params_f32, force_hid_tiling=True)
    jax.block_until_ready(out_tiled)
    assert jnp.allclose(out_tiled, ref, atol=1e-5, rtol=1e-5)

    print("KERNEL_OK")
</pallas_src>

<mosaic_0001>
module attributes {stable_mosaic.version = 11 : i64} {
  func.func @fnn_resident_kernel(%arg0: i32, %arg1: memref<16x128xbf16, #tpu.memory_space<vmem>>, %arg2: memref<128x128xbf16, #tpu.memory_space<vmem>>, %arg3: memref<1x128xf32, #tpu.memory_space<vmem>>, %arg4: memref<128x128xbf16, #tpu.memory_space<vmem>>, %arg5: memref<1x128xf32, #tpu.memory_space<vmem>>, %arg6: memref<16x128xf32, #tpu.memory_space<vmem>>) attributes {dimension_semantics = [#tpu.dimension_semantics<parallel>], iteration_bounds = array<i64: 1>, scalar_prefetch = 0 : i64, scratch_operands = 0 : i64, tpu.core_type = #tpu.core_type<tc>, window_params = [{transform_indices = @transform_0, window_bounds = array<i64: 16, 128>}, {pipeline_mode = #tpu.pipeline_mode<synchronous>, transform_indices = @transform_1, window_bounds = array<i64: 128, 128>}, {pipeline_mode = #tpu.pipeline_mode<synchronous>, transform_indices = @transform_2, window_bounds = array<i64: 1, 128>}, {pipeline_mode = #tpu.pipeline_mode<synchronous>, transform_indices = @transform_3, window_bounds = array<i64: 128, 128>}, {pipeline_mode = #tpu.pipeline_mode<synchronous>, transform_indices = @transform_4, window_bounds = array<i64: 1, 128>}, {transform_indices = @transform_5, window_bounds = array<i64: 16, 128>}]} {
    %c0 = arith.constant 0 : index
    %c0_0 = arith.constant 0 : index
    %0 = vector.load %arg3[%c0, %c0_0] : memref<1x128xf32, #tpu.memory_space<vmem>>, vector<1x128xf32>
    %c0_1 = arith.constant 0 : index
    %c0_2 = arith.constant 0 : index
    %1 = vector.load %arg1[%c0_1, %c0_2] : memref<16x128xbf16, #tpu.memory_space<vmem>>, vector<16x128xbf16>
    %c0_3 = arith.constant 0 : index
    %c0_4 = arith.constant 0 : index
    %2 = vector.load %arg2[%c0_3, %c0_4] : memref<128x128xbf16, #tpu.memory_space<vmem>>, vector<128x128xbf16>
    %cst = arith.constant dense<0.000000e+00> : vector<16x128xf32>
    %3 = tpu.matmul %1, %2, %cst {dimension_numbers = #tpu.dot_dimension_numbers<[1], [0], [0], [1], [0, 0, 1, 1], [], []>} : vector<16x128xbf16>, vector<128x128xbf16>, vector<16x128xf32> -> vector<16x128xf32>
    %4 = vector.broadcast %0 : vector<1x128xf32> to vector<16x128xf32>
    %5 = arith.addf %4, %3 : vector<16x128xf32>
    %cst_5 = arith.constant 0.000000e+00 : f32
    %6 = vector.broadcast %cst_5 : f32 to vector<16x128xf32>
    %7 = arith.maximumf %5, %6 : vector<16x128xf32>
    %c0_6 = arith.constant 0 : index
    %c0_7 = arith.constant 0 : index
    %8 = vector.load %arg5[%c0_6, %c0_7] : memref<1x128xf32, #tpu.memory_space<vmem>>, vector<1x128xf32>
    %9 = arith.truncf %7 : vector<16x128xf32> to vector<16x128xbf16>
    %c0_8 = arith.constant 0 : index
    %c0_9 = arith.constant 0 : index
    %10 = vector.load %arg4[%c0_8, %c0_9] : memref<128x128xbf16, #tpu.memory_space<vmem>>, vector<128x128xbf16>
    %cst_10 = arith.constant dense<0.000000e+00> : vector<16x128xf32>
    %11 = tpu.matmul %9, %10, %cst_10 {dimension_numbers = #tpu.dot_dimension_numbers<[1], [0], [0], [1], [0, 0, 1, 1], [], []>} : vector<16x128xbf16>, vector<128x128xbf16>, vector<16x128xf32> -> vector<16x128xf32>
    %12 = vector.broadcast %8 : vector<1x128xf32> to vector<16x128xf32>
    %13 = arith.addf %12, %11 : vector<16x128xf32>
    %c0_11 = arith.constant 0 : index
    %c0_12 = arith.constant 0 : index
    %14 = vector.load %arg6[%c0_11, %c0_12] : memref<16x128xf32, #tpu.memory_space<vmem>>, vector<16x128xf32>
    tpu.vector_store %arg6[%c0_11, %c0_12], %13 {strides = array<i32>} : memref<16x128xf32, #tpu.memory_space<vmem>>, vector<16x128xf32>,
    return
  }
  func.func @transform_0(%arg0: i32) -> (i32, i32) {
    %c0_i32 = arith.constant 0 : i32
    %c0_i32_0 = arith.constant 0 : i32
    return %arg0, %c0_i32 : i32, i32
  }
  func.func @transform_1(%arg0: i32) -> (i32, i32) {
    %c0_i32 = arith.constant 0 : i32
    %c0_i32_0 = arith.constant 0 : i32
    %c0_i32_1 = arith.constant 0 : i32
    return %c0_i32, %c0_i32_0 : i32, i32
  }
  func.func @transform_2(%arg0: i32) -> (i32, i32) {
    %c0_i32 = arith.constant 0 : i32
    %c0_i32_0 = arith.constant 0 : i32
    %c0_i32_1 = arith.constant 0 : i32
    return %c0_i32, %c0_i32_0 : i32, i32
  }
  func.func @transform_3(%arg0: i32) -> (i32, i32) {
    %c0_i32 = arith.constant 0 : i32
    %c0_i32_0 = arith.constant 0 : i32
    %c0_i32_1 = arith.constant 0 : i32
    return %c0_i32, %c0_i32_0 : i32, i32
  }
  func.func @transform_4(%arg0: i32) -> (i32, i32) {
    %c0_i32 = arith.constant 0 : i32
    %c0_i32_0 = arith.constant 0 : i32
    %c0_i32_1 = arith.constant 0 : i32
    return %c0_i32, %c0_i32_0 : i32, i32
  }
  func.func @transform_5(%arg0: i32) -> (i32, i32) {
    %c0_i32 = arith.constant 0 : i32
    %c0_i32_0 = arith.constant 0 : i32
    return %arg0, %c0_i32 : i32, i32
  }
}

module attributes {stable_mosaic.version = 11 : i64} {
  func.func @fnn_resident_kernel(%arg0: i32, %arg1: memref<16x128xbf16, #tpu.memory_space<vmem>>, %arg2: memref<128x128xbf16, #tpu.memory_space<vmem>>, %arg3: memref<1x128xf32, #tpu.memory_space<vmem>>, %arg4: memref<128x128xbf16, #tpu.memory_space<vmem>>, %arg5: memref<1x128xf32, #tpu.memory_space<vmem>>, %arg6: memref<16x128xf32, #tpu.memory_space<vmem>>) attributes {dimension_semantics = [#tpu.dimension_semantics<parallel>], iteration_bounds = array<i64: 1>, scalar_prefetch = 0 : i64, scratch_operands = 0 : i64, tpu.core_type = #tpu.core_type<tc>, window_params = [{transform_indices = @transform_0, window_bounds = array<i64: 16, 128>}, {pipeline_mode = #tpu.pipeline_mode<synchronous>, transform_indices = @transform_1, window_bounds = array<i64: 128, 128>}, {pipeline_mode = #tpu.pipeline_mode<synchronous>, transform_indices = @transform_2, window_bounds = array<i64: 1, 128>}, {pipeline_mode = #tpu.pipeline_mode<synchronous>, transform_indices = @transform_3, window_bounds = array<i64: 128, 128>}, {pipeline_mode = #tpu.pipeline_mode<synchronous>, transform_indices = @transform_4, window_bounds = array<i64: 1, 128>}, {transform_indices = @transform_5, window_bounds = array<i64: 16, 128>}]} {
    %c0 = arith.constant 0 : index
    %c0_0 = arith.constant 0 : index
    %0 = vector.load %arg3[%c0, %c0_0] : memref<1x128xf32, #tpu.memory_space<vmem>>, vector<1x128xf32>
    %c0_1 = arith.constant 0 : index
    %c0_2 = arith.constant 0 : index
    %1 = vector.load %arg1[%c0_1, %c0_2] : memref<16x128xbf16, #tpu.memory_space<vmem>>, vector<16x128xbf16>
    %c0_3 = arith.constant 0 : index
    %c0_4 = arith.constant 0 : index
    %2 = vector.load %arg2[%c0_3, %c0_4] : memref<128x128xbf16, #tpu.memory_space<vmem>>, vector<128x128xbf16>
    %cst = arith.constant dense<0.000000e+00> : vector<16x128xf32>
    %3 = tpu.matmul %1, %2, %cst {dimension_numbers = #tpu.dot_dimension_numbers<[1], [0], [0], [1], [0, 0, 1, 1], [], []>} : vector<16x128xbf16>, vector<128x128xbf16>, vector<16x128xf32> -> vector<16x128xf32>
    %4 = vector.broadcast %0 : vector<1x128xf32> to vector<16x128xf32>
    %5 = arith.addf %4, %3 : vector<16x128xf32>
    %cst_5 = arith.constant 0.000000e+00 : f32
    %6 = vector.broadcast %cst_5 : f32 to vector<16x128xf32>
    %7 = arith.maximumf %5, %6 : vector<16x128xf32>
    %c0_6 = arith.constant 0 : index
    %c0_7 = arith.constant 0 : index
    %8 = vector.load %arg5[%c0_6, %c0_7] : memref<1x128xf32, #tpu.memory_space<vmem>>, vector<1x128xf32>
    %9 = arith.truncf %7 : vector<16x128xf32> to vector<16x128xbf16>
    %c0_8 = arith.constant 0 : index
    %c0_9 = arith.constant 0 : index
    %10 = vector.load %arg4[%c0_8, %c0_9] : memref<128x128xbf16, #tpu.memory_space<vmem>>, vector<128x128xbf16>
    %cst_10 = arith.constant dense<0.000000e+00> : vector<16x128xf32>
    %11 = tpu.matmul %9, %10, %cst_10 {dimension_numbers = #tpu.dot_dimension_numbers<[1], [0], [0], [1], [0, 0, 1, 1], [], []>} : vector<16x128xbf16>, vector<128x128xbf16>, vector<16x128xf32> -> vector<16x128xf32>
    %12 = vector.broadcast %8 : vector<1x128xf32> to vector<16x128xf32>
    %13 = arith.addf %12, %11 : vector<16x128xf32>
    %c0_11 = arith.constant 0 : index
    %c0_12 = arith.constant 0 : index
    %14 = vector.load %arg6[%c0_11, %c0_12] : memref<16x128xf32, #tpu.memory_space<vmem>>, vector<16x128xf32>
    tpu.vector_store %arg6[%c0_11, %c0_12], %13 {strides = array<i32>} : memref<16x128xf32, #tpu.memory_space<vmem>>, vector<16x128xf32>,
    return
  }
  func.func @transform_0(%arg0: i32) -> (i32, i32) {
    %c0_i32 = arith.constant 0 : i32
    %c0_i32_0 = arith.constant 0 : i32
    return %arg0, %c0_i32 : i32, i32
  }
  func.func @transform_1(%arg0: i32) -> (i32, i32) {
    %c0_i32 = arith.constant 0 : i32
    %c0_i32_0 = arith.constant 0 : i32
    %c0_i32_1 = arith.constant 0 : i32
    return %c0_i32, %c0_i32_0 : i32, i32
  }
  func.func @transform_2(%arg0: i32) -> (i32, i32) {
    %c0_i32 = arith.constant 0 : i32
    %c0_i32_0 = arith.constant 0 : i32
    %c0_i32_1 = arith.constant 0 : i32
    return %c0_i32, %c0_i32_0 : i32, i32
  }
  func.func @transform_3(%arg0: i32) -> (i32, i32) {
    %c0_i32 = arith.constant 0 : i32
    %c0_i32_0 = arith.constant 0 : i32
    %c0_i32_1 = arith.constant 0 : i32
    return %c0_i32, %c0_i32_0 : i32, i32
  }
  func.func @transform_4(%arg0: i32) -> (i32, i32) {
    %c0_i32 = arith.constant 0 : i32
    %c0_i32_0 = arith.constant 0 : i32
    %c0_i32_1 = arith.constant 0 : i32
    return %c0_i32, %c0_i32_0 : i32, i32
  }
  func.func @transform_5(%arg0: i32) -> (i32, i32) {
    %c0_i32 = arith.constant 0 : i32
    %c0_i32_0 = arith.constant 0 : i32
    return %arg0, %c0_i32 : i32, i32
  }
}

</mosaic_0001>

<llo_original>
// kernel: tpu_custom_call.1
$region0: #{tpu_custom_call.1}
  #allocation0 [shape = 'u32[]', space=smem, size = 0x4, offset = 0x4, fixed_abs, tag = 'smem constant byte address 0x4 - core index']
  #allocation1 [shape = 'u32[144,128]{1,0:T(1,128)}', space=vmem, size = 0x12000, scoped, tag = 'internal scratch']
  %s0 = inlined_call_operand.hbm [shape: bf16[2,128], index: 0, kind: input, shape index: {}]
  %s1 = inlined_call_operand.hbm [shape: bf16[128,128], index: 1, kind: input, shape index: {}]
  %s2 = inlined_call_operand.vmem [shape: f32[1,128], index: 2, kind: input, shape index: {}]
  %s3 = inlined_call_operand.hbm [shape: bf16[128,128], index: 3, kind: input, shape index: {}]
  %s4 = inlined_call_operand.vmem [shape: f32[1,128], index: 4, kind: input, shape index: {}]
  %s5 = inlined_call_operand.hbm [shape: f32[2,128], index: 5, kind: output, shape index: {}]
  %s6 = sld [smem:[#allocation0]]
  $region42: #{tpu_custom_call.1} parent=0
    _
  %s8 = ssub.s32 1, %s6
  %s9 = scalar_select 0, %s8, %s6
  $region1: #{tpu_custom_call.1} parent=0
    #allocation2 [shape = 'u8[4096]{0}', space=vmem, size = 0x1000, scoped, tag = 'input window, operand 0, single buffered']
    #allocation3 [shape = 's32[1]{0}', space=sflag, size = 0x4, scoped, tag = 'scoped memory for tpu_custom_call.1']
    #allocation4 [shape = 's32[1]{0}', space=sflag, size = 0x4, scoped, tag = 'scoped memory for tpu_custom_call.1']
    #allocation5 [shape = 'u8[32768]{0}', space=vmem, size = 0x8000, scoped, tag = 'input window, operand 1, single buffered']
    #allocation6 [shape = 's32[1]{0}', space=sflag, size = 0x4, scoped, tag = 'scoped memory for tpu_custom_call.1']
    #allocation7 [shape = 'u8[32768]{0}', space=vmem, size = 0x8000, scoped, tag = 'input window, operand 3, single buffered']
    #allocation8 [shape = 'u8[8192]{0}', space=vmem, size = 0x2000, scoped, tag = 'output window, operand 0, single buffered']
    %10 = vsyncpa [#allocation3], 0
    %11 = vsyncpa [#allocation6], 0
    %12 = vsyncpa [#allocation4], 0
    // Predicated region
    $region2: #{tpu_custom_call.1} parent=1 // pred_check
      _
    $region3: #{tpu_custom_call.1} parent=1 // pred_check_branch
      %14 = sbr.rel (0) target = $region5
    $region4: #{tpu_custom_call.1} parent=1 // pred_region
      %s16 = ssub.s32 128, 16
      %17 = vsyncadd [#allocation3], %s16
      %s18 = sshll.u32 [#allocation2], 4
      %s19 = int_to_ptr.vmem [resolvable:$true] %s18
      %24 = dma.hbm_to_vmem [thread:$0]  %s0, 16, %s19, [#allocation3], 16, 16, 1
    $region5: #{tpu_custom_call.1} parent=1 // pred_fallthru
      _
    // Predicated region
    $region6: #{tpu_custom_call.1} parent=1 // pred_check
      _
    $region7: #{tpu_custom_call.1} parent=1 // pred_check_branch
      %26 = sbr.rel (0) target = $region9
    $region8: #{tpu_custom_call.1} parent=1 // pred_region
      %s28 = ssub.s32 1024, 1024
      %29 = vsyncadd [#allocation6], %s28
      %s30 = sshll.u32 [#allocation5], 4
      %s31 = int_to_ptr.vmem [resolvable:$true] %s30
      %36 = dma.hbm_to_vmem [thread:$0]  %s1, 1024, %s31, [#allocation6], 64, 64, 4
    $region9: #{tpu_custom_call.1} parent=1 // pred_fallthru
      _
    // Predicated region
    $region10: #{tpu_custom_call.1} parent=1 // pred_check
      _
    $region11: #{tpu_custom_call.1} parent=1 // pred_check_branch
      %38 = sbr.rel (0) target = $region13
    $region12: #{tpu_custom_call.1} parent=1 // pred_region
      _
    $region13: #{tpu_custom_call.1} parent=1 // pred_fallthru
      _
    // Predicated region
    $region14: #{tpu_custom_call.1} parent=1 // pred_check
      _
    $region15: #{tpu_custom_call.1} parent=1 // pred_check_branch
      %40 = sbr.rel (0) target = $region17
    $region16: #{tpu_custom_call.1} parent=1 // pred_region
      %s42 = ssub.s32 1024, 1024
      %43 = vsyncadd [#allocation6], %s42
      %s44 = sshll.u32 [#allocation7], 4
      %s45 = int_to_ptr.vmem [resolvable:$true] %s44
      %50 = dma.hbm_to_vmem [thread:$0]  %s3, 1024, %s45, [#allocation6], 64, 64, 4
    $region17: #{tpu_custom_call.1} parent=1 // pred_fallthru
      _
    // Predicated region
    $region18: #{tpu_custom_call.1} parent=1 // pred_check
      _
    $region19: #{tpu_custom_call.1} parent=1 // pred_check_branch
      %52 = sbr.rel (0) target = $region21
    $region20: #{tpu_custom_call.1} parent=1 // pred_region
      _
    $region21: #{tpu_custom_call.1} parent=1 // pred_fallthru
      _
    // Predicated region
    $region22: #{tpu_custom_call.1} parent=1 // pred_check
      _
    $region23: #{tpu_custom_call.1} parent=1 // pred_check_branch
      %54 = sbr.rel (0) target = $region25
    $region24: #{tpu_custom_call.1} parent=1 // pred_region
      %55 = dma.done [#allocation3], 128
    $region25: #{tpu_custom_call.1} parent=1 // pred_fallthru
      _
    // Predicated region
    $region26: #{tpu_custom_call.1} parent=1 // pred_check
      _
    $region27: #{tpu_custom_call.1} parent=1 // pred_check_branch
      %57 = sbr.rel (0) target = $region29
    $region28: #{tpu_custom_call.1} parent=1 // pred_region
      %58 = dma.done [#allocation6], 1024
    $region29: #{tpu_custom_call.1} parent=1 // pred_fallthru
      _
    // Predicated region
    $region30: #{tpu_custom_call.1} parent=1 // pred_check
      _
    $region31: #{tpu_custom_call.1} parent=1 // pred_check_branch
      %60 = sbr.rel (0) target = $region33
    $region32: #{tpu_custom_call.1} parent=1 // pred_region
      %61 = dma.done [#allocation6], 1024
    $region33: #{tpu_custom_call.1} parent=1 // pred_fallthru
      _
    %v63 = vld [vmem:[%s2] sm:$0x1]
    %v64 = vld [vmem:[#allocation2] sm:$0x1]
    %v65 = vld [vmem:[#allocation2 + $0x1] sm:$0x1]
    %v66 = vld [vmem:[#allocation2 + $0x2] sm:$0x1]
    %v67 = vld [vmem:[#allocation2 + $0x3] sm:$0x1]
    %v68 = vld [vmem:[#allocation2 + $0x4] sm:$0x1]
    %v69 = vld [vmem:[#allocation2 + $0x5] sm:$0x1]
    %v70 = vld [vmem:[#allocation2 + $0x6] sm:$0x1]
    %v71 = vld [vmem:[#allocation2 + $0x7] sm:$0x1]
    %v72 = vld [vmem:[#allocation5] sm:$0xf]
    %v73 = vld [vmem:[#allocation5 + $0x4] sm:$0xf]
    %v74 = vld [vmem:[#allocation5 + $0x8] sm:$0xf]
    %v75 = vld [vmem:[#allocation5 + $0xc] sm:$0xf]
    %v76 = vld [vmem:[#allocation5 + $0x10] sm:$0xf]
    %v77 = vld [vmem:[#allocation5 + $0x14] sm:$0xf]
    %v78 = vld [vmem:[#allocation5 + $0x18] sm:$0xf]
    %v79 = vld [vmem:[#allocation5 + $0x1c] sm:$0xf]
    %v80 = vld [vmem:[#allocation5 + $0x20] sm:$0xf]
    %v81 = vld [vmem:[#allocation5 + $0x24] sm:$0xf]
    %v82 = vld [vmem:[#allocation5 + $0x28] sm:$0xf]
    %v83 = vld [vmem:[#allocation5 + $0x2c] sm:$0xf]
    %v84 = vld [vmem:[#allocation5 + $0x30] sm:$0xf]
    %v85 = vld [vmem:[#allocation5 + $0x34] sm:$0xf]
    %v86 = vld [vmem:[#allocation5 + $0x38] sm:$0xf]
    %v87 = vld [vmem:[#allocation5 + $0x3c] sm:$0xf]
    %v96 = vcombine.low %v64, %v65
    %v97 = vcombine.low %v66, %v67
    %v98 = vcombine.low %v68, %v69
    %v99 = vcombine.low %v70, %v71
    %v101 = vunpack.c.l.s4 1966171168
    %v102 = vunpack.c.0.s8 %v101
    %v103 = vlaneseq
    %v104 = vshrl.u32 %v103, 7
    %v105 = vsub.s32 %v102, %v104
    %v106 = vrot.slane %v96, %v105
    %v108 = vunpack.c.l.s4 1966171168
    %v109 = vunpack.c.0.s8 %v108
    %v110 = vlaneseq
    %v111 = vshrl.u32 %v110, 7
    %v112 = vsub.s32 %v109, %v111
    %v113 = vrot.slane %v97, %v112
    %v115 = vunpack.c.l.s4 1966171168
    %v116 = vunpack.c.0.s8 %v115
    %v117 = vlaneseq
    %v118 = vshrl.u32 %v117, 7
    %v119 = vsub.s32 %v116, %v118
    %v120 = vrot.slane %v98, %v119
    %v122 = vunpack.c.l.s4 1966171168
    %v123 = vunpack.c.0.s8 %v122
    %v124 = vlaneseq
    %v125 = vshrl.u32 %v124, 7
    %v126 = vsub.s32 %v123, %v125
    %v127 = vrot.slane %v99, %v126
    %v128 = vcombine.low %v106, %v113
    %v129 = vcombine.low %v120, %v127
    %v131 = vunpack.c.l.s4 1966171168
    %v132 = vunpack.c.0.s8 %v131
    %v133 = vlaneseq
    %v134 = vshrl.u32 %v133, 7
    %v135 = vsub.s32 %v132, %v134
    %v136 = vrot.slane %v128, %v135
    %v138 = vunpack.c.l.s4 1966171168
    %v139 = vunpack.c.0.s8 %v138
    %v140 = vlaneseq
    %v141 = vshrl.u32 %v140, 7
    %v142 = vsub.s32 %v139, %v141
    %v143 = vrot.slane %v129, %v142
    %v144 = vcombine.low %v136, %v143
    %v162 = vunpack.c.l.b16 %v72
    %v163 = vunpack.c.l.b16 %v73
    %v164 = vunpack.c.l.b16 %v74
    %v165 = vunpack.c.l.b16 %v75
    %v166 = vunpack.c.l.b16 %v76
    %v167 = vunpack.c.l.b16 %v77
    %v168 = vunpack.c.l.b16 %v78
    %v169 = vunpack.c.l.b16 %v79
    %v170 = vunpack.c.l.b16 %v80
    %v171 = vunpack.c.l.b16 %v81
    %v172 = vunpack.c.l.b16 %v82
    %v173 = vunpack.c.l.b16 %v83
    %v174 = vunpack.c.l.b16 %v84
    %v175 = vunpack.c.l.b16 %v85
    %v176 = vunpack.c.l.b16 %v86
    %v177 = vunpack.c.l.b16 %v87
    %v178 = vpack.c.b16 %v163, %v162
    %v179 = vpack.c.b16 %v165, %v164
    %v180 = vpack.c.b16 %v167, %v166
    %v181 = vpack.c.b16 %v169, %v168
    %v182 = vpack.c.b16 %v171, %v170
    %v183 = vpack.c.b16 %v173, %v172
    %v184 = vpack.c.b16 %v175, %v174
    %v185 = vpack.c.b16 %v177, %v176
    %194 = vmatprep.subr.bf16.mxu0 0
    %195 = vmatpush1.bf16.msra.mxu0 %v178
    %196 = vmatprep.subr.bf16.mxu0 0
    %197 = vmatpush1.bf16.msra.mxu0 %v179
    %198 = vmatprep.subr.bf16.mxu0 0
    %199 = vmatpush1.bf16.msra.mxu0 %v180
    %200 = vmatprep.subr.bf16.mxu0 0
    %201 = vmatpush1.bf16.msra.mxu0 %v181
    %202 = vmatprep.subr.bf16.mxu0 0
    %203 = vmatpush1.bf16.msra.mxu0 %v182
    %204 = vmatprep.subr.bf16.mxu0 0
    %205 = vmatpush1.bf16.msra.mxu0 %v183
    %206 = vmatprep.subr.bf16.mxu0 0
    %207 = vmatpush1.bf16.msra.mxu0 %v184
    %208 = vmatprep.subr.bf16.mxu0 0
    %209 = vmatpush1.bf16.msra.mxu0 %v185
    %210 = vmatprep.subr.bf16.mxu0 0
    %211 = vmatpush1.bf16.msra.mxu0 0
    %212 = vmatprep.subr.bf16.mxu0 0
    %213 = vmatpush1.bf16.msra.mxu0 0
    %214 = vmatprep.subr.bf16.mxu0 0
    %215 = vmatpush1.bf16.msra.mxu0 0
    %216 = vmatprep.subr.bf16.mxu0 0
    %217 = vmatpush1.bf16.msra.mxu0 0
    %218 = vmatprep.subr.bf16.mxu0 0
    %219 = vmatpush1.bf16.msra.mxu0 0
    %220 = vmatprep.subr.bf16.mxu0 0
    %221 = vmatpush1.bf16.msra.mxu0 0
    %222 = vmatprep.subr.bf16.mxu0 0
    %223 = vmatpush1.bf16.msra.mxu0 0
    %224 = vmatprep.subr.bf16.mxu0 0
    %225 = vmatpush1.bf16.msra.mxu0 0
    %226 = vmatprep.mubr.bf16.mxu0 0
    %227 = vmatmul.mubr.bf16.gmra.mrb[0].mxu0 %v144
    %v228 = vpop.f32.mrb[0].mxu0
    %v229 = vadd.f32 0.0, %v228
    %v230 = vpop.f32.mrb[0].mxu0
    %v231 = vpop.f32.mrb[0].mxu0
    %v232 = vadd.f32 0.0, %v231
    %v233 = vpop.f32.mrb[0].mxu0
    %234 = vdwg.mxu0
    %v236 = vlaneseq
    %v237 = vshrl.u32 %v236, 7
    %v238 = vsub.s32 0, %v237
    %v239 = vrot.slane %v63, %v238
    %v241 = vadd.f32 %v239, %v229
    %v242 = vadd.f32 %v239, %v232
    %v243 = vmax.f32 %v241, 0.0
    %v244 = vmax.f32 %v242, 0.0
    %v245 = vld [vmem:[%s4] sm:$0x1]
    %v246 = vpack.c.bf16 %v244, %v243
    %v247 = vld [vmem:[#allocation7] sm:$0xf]
    %v248 = vld [vmem:[#allocation7 + $0x4] sm:$0xf]
    %v249 = vld [vmem:[#allocation7 + $0x8] sm:$0xf]
    %v250 = vld [vmem:[#allocation7 + $0xc] sm:$0xf]
    %v251 = vld [vmem:[#allocation7 + $0x10] sm:$0xf]
    %v252 = vld [vmem:[#allocation7 + $0x14] sm:$0xf]
    %v253 = vld [vmem:[#allocation7 + $0x18] sm:$0xf]
    %v254 = vld [vmem:[#allocation7 + $0x1c] sm:$0xf]
    %v255 = vld [vmem:[#allocation7 + $0x20] sm:$0xf]
    %v256 = vld [vmem:[#allocation7 + $0x24] sm:$0xf]
    %v257 = vld [vmem:[#allocation7 + $0x28] sm:$0xf]
    %v258 = vld [vmem:[#allocation7 + $0x2c] sm:$0xf]
    %v259 = vld [vmem:[#allocation7 + $0x30] sm:$0xf]
    %v260 = vld [vmem:[#allocation7 + $0x34] sm:$0xf]
    %v261 = vld [vmem:[#allocation7 + $0x38] sm:$0xf]
    %v262 = vld [vmem:[#allocation7 + $0x3c] sm:$0xf]
    %v279 = vunpack.c.l.b16 %v247
    %v280 = vunpack.c.l.b16 %v248
    %v281 = vunpack.c.l.b16 %v249
    %v282 = vunpack.c.l.b16 %v250
    %v283 = vunpack.c.l.b16 %v251
    %v284 = vunpack.c.l.b16 %v252
    %v285 = vunpack.c.l.b16 %v253
    %v286 = vunpack.c.l.b16 %v254
    %v287 = vunpack.c.l.b16 %v255
    %v288 = vunpack.c.l.b16 %v256
    %v289 = vunpack.c.l.b16 %v257
    %v290 = vunpack.c.l.b16 %v258
    %v291 = vunpack.c.l.b16 %v259
    %v292 = vunpack.c.l.b16 %v260
    %v293 = vunpack.c.l.b16 %v261
    %v294 = vunpack.c.l.b16 %v262
    %v295 = vpack.c.b16 %v280, %v279
    %v296 = vpack.c.b16 %v282, %v281
    %v297 = vpack.c.b16 %v284, %v283
    %v298 = vpack.c.b16 %v286, %v285
    %v299 = vpack.c.b16 %v288, %v287
    %v300 = vpack.c.b16 %v290, %v289
    %v301 = vpack.c.b16 %v292, %v291
    %v302 = vpack.c.b16 %v294, %v293
    %311 = vmatprep.subr.bf16.mxu0 0
    %312 = vmatpush1.bf16.msra.mxu0 %v295
    %313 = vmatprep.subr.bf16.mxu0 0
    %314 = vmatpush1.bf16.msra.mxu0 %v296
    %315 = vmatprep.subr.bf16.mxu0 0
    %316 = vmatpush1.bf16.msra.mxu0 %v297
    %317 = vmatprep.subr.bf16.mxu0 0
    %318 = vmatpush1.bf16.msra.mxu0 %v298
    %319 = vmatprep.subr.bf16.mxu0 0
    %320 = vmatpush1.bf16.msra.mxu0 %v299
    %321 = vmatprep.subr.bf16.mxu0 0
    %322 = vmatpush1.bf16.msra.mxu0 %v300
    %323 = vmatprep.subr.bf16.mxu0 0
    %324 = vmatpush1.bf16.msra.mxu0 %v301
    %325 = vmatprep.subr.bf16.mxu0 0
    %326 = vmatpush1.bf16.msra.mxu0 %v302
    %327 = vmatprep.subr.bf16.mxu0 0
    %328 = vmatpush1.bf16.msra.mxu0 0
    %329 = vmatprep.subr.bf16.mxu0 0
    %330 = vmatpush1.bf16.msra.mxu0 0
    %331 = vmatprep.subr.bf16.mxu0 0
    %332 = vmatpush1.bf16.msra.mxu0 0
    %333 = vmatprep.subr.bf16.mxu0 0
    %334 = vmatpush1.bf16.msra.mxu0 0
    %335 = vmatprep.subr.bf16.mxu0 0
    %336 = vmatpush1.bf16.msra.mxu0 0
    %337 = vmatprep.subr.bf16.mxu0 0
    %338 = vmatpush1.bf16.msra.mxu0 0
    %339 = vmatprep.subr.bf16.mxu0 0
    %340 = vmatpush1.bf16.msra.mxu0 0
    %341 = vmatprep.subr.bf16.mxu0 0
    %342 = vmatpush1.bf16.msra.mxu0 0
    %343 = vmatprep.mubr.bf16.mxu0 0
    %344 = vmatmul.mubr.bf16.gmra.mrb[0].mxu0 %v246
    %v345 = vpop.f32.mrb[0].mxu0
    %v346 = vadd.f32 0.0, %v345
    %v347 = vpop.f32.mrb[0].mxu0
    %v348 = vpop.f32.mrb[0].mxu0
    %v349 = vadd.f32 0.0, %v348
    %v350 = vpop.f32.mrb[0].mxu0
    %351 = vdwg.mxu0
    %v353 = vlaneseq
    %v354 = vshrl.u32 %v353, 7
    %v355 = vsub.s32 0, %v354
    %v356 = vrot.slane %v245, %v355
    %v358 = vadd.f32 %v356, %v346
    %v359 = vadd.f32 %v356, %v349
    %360 = vst [vmem:[#allocation8] sm:$0xff] %v358
    %361 = vst [vmem:[#allocation8 + $0x8] sm:$0xff] %v359
    // Predicated region
    $region34: #{tpu_custom_call.1} parent=1 // pred_check
      _
    $region35: #{tpu_custom_call.1} parent=1 // pred_check_branch
      %363 = sbr.rel (0) target = $region37
    $region36: #{tpu_custom_call.1} parent=1 // pred_region
      %s365 = ssub.s32 256, 32
      %366 = vsyncadd [#allocation4], %s365
      %s367 = sshll.u32 [#allocation8], 4
      %s368 = int_to_ptr.vmem [resolvable:$true] %s367
      %373 = dma.vmem_to_hbm [thread:$0]  %s368, 32, %s5, [#allocation4], 32, 32, 2
    $region37: #{tpu_custom_call.1} parent=1 // pred_fallthru
      _
    // Predicated region
    $region38: #{tpu_custom_call.1} parent=1 // pred_check
      _
    $region39: #{tpu_custom_call.1} parent=1 // pred_check_branch
      %375 = sbr.rel (0) target = $region41
    $region40: #{tpu_custom_call.1} parent=1 // pred_region
      %376 = dma.done [#allocation4], 256
    $region41: #{tpu_custom_call.1} parent=1 // pred_fallthru
      _
    %377 = vsyncpa [#allocation3], 1
    %378 = vsyncpa [#allocation6], 1
    %379 = vsyncpa [#allocation4], 1

// kernel: tpu_custom_call.1
$region0: #{tpu_custom_call.1}
  #allocation0 [shape = 'u32[]', space=smem, size = 0x4, offset = 0x4, fixed_abs, tag = 'smem constant byte address 0x4 - core index']
  #allocation1 [shape = 'u32[144,128]{1,0:T(1,128)}', space=vmem, size = 0x12000, scoped, tag = 'internal scratch']
  %s0 = inlined_call_operand.hbm [shape: bf16[2,128], index: 0, kind: input, shape index: {}]
  %s1 = inlined_call_operand.hbm [shape: bf16[128,128], index: 1, kind: input, shape index: {}]
  %s2 = inlined_call_operand.vmem [shape: f32[1,128], index: 2, kind: input, shape index: {}]
  %s3 = inlined_call_operand.hbm [shape: bf16[128,128], index: 3, kind: input, shape index: {}]
  %s4 = inlined_call_operand.vmem [shape: f32[1,128], index: 4, kind: input, shape index: {}]
  %s5 = inlined_call_operand.hbm [shape: f32[2,128], index: 5, kind: output, shape index: {}]
  %s6 = sld [smem:[#allocation0]]
  $region42: #{tpu_custom_call.1} parent=0
    _
  %s8 = ssub.s32 1, %s6
  %s9 = scalar_select 0, %s8, %s6
  $region1: #{tpu_custom_call.1} parent=0
    #allocation2 [shape = 'u8[4096]{0}', space=vmem, size = 0x1000, scoped, tag = 'input window, operand 0, single buffered']
    #allocation3 [shape = 's32[1]{0}', space=sflag, size = 0x4, scoped, tag = 'scoped memory for tpu_custom_call.1']
    #allocation4 [shape = 's32[1]{0}', space=sflag, size = 0x4, scoped, tag = 'scoped memory for tpu_custom_call.1']
    #allocation5 [shape = 'u8[32768]{0}', space=vmem, size = 0x8000, scoped, tag = 'input window, operand 1, single buffered']
    #allocation6 [shape = 's32[1]{0}', space=sflag, size = 0x4, scoped, tag = 'scoped memory for tpu_custom_call.1']
    #allocation7 [shape = 'u8[32768]{0}', space=vmem, size = 0x8000, scoped, tag = 'input window, operand 3, single buffered']
    #allocation8 [shape = 'u8[8192]{0}', space=vmem, size = 0x2000, scoped, tag = 'output window, operand 0, single buffered']
    %10 = vsyncpa [#allocation3], 0
    %11 = vsyncpa [#allocation6], 0
    %12 = vsyncpa [#allocation4], 0
    // Predicated region
    $region2: #{tpu_custom_call.1} parent=1 // pred_check
      _
    $region3: #{tpu_custom_call.1} parent=1 // pred_check_branch
      %14 = sbr.rel (0) target = $region5
    $region4: #{tpu_custom_call.1} parent=1 // pred_region
      %s16 = ssub.s32 128, 16
      %17 = vsyncadd [#allocation3], %s16
      %s18 = sshll.u32 [#allocation2], 4
      %s19 = int_to_ptr.vmem [resolvable:$true] %s18
      %24 = dma.hbm_to_vmem [thread:$0]  %s0, 16, %s19, [#allocation3], 16, 16, 1
    $region5: #{tpu_custom_call.1} parent=1 // pred_fallthru
      _
    // Predicated region
    $region6: #{tpu_custom_call.1} parent=1 // pred_check
      _
    $region7: #{tpu_custom_call.1} parent=1 // pred_check_branch
      %26 = sbr.rel (0) target = $region9
    $region8: #{tpu_custom_call.1} parent=1 // pred_region
      %s28 = ssub.s32 1024, 1024
      %29 = vsyncadd [#allocation6], %s28
      %s30 = sshll.u32 [#allocation5], 4
      %s31 = int_to_ptr.vmem [resolvable:$true] %s30
      %36 = dma.hbm_to_vmem [thread:$0]  %s1, 1024, %s31, [#allocation6], 64, 64, 4
    $region9: #{tpu_custom_call.1} parent=1 // pred_fallthru
      _
    // Predicated region
    $region10: #{tpu_custom_call.1} parent=1 // pred_check
      _
    $region11: #{tpu_custom_call.1} parent=1 // pred_check_branch
      %38 = sbr.rel (0) target = $region13
    $region12: #{tpu_custom_call.1} parent=1 // pred_region
      _
    $region13: #{tpu_custom_call.1} parent=1 // pred_fallthru
      _
    // Predicated region
    $region14: #{tpu_custom_call.1} parent=1 // pred_check
      _
    $region15: #{tpu_custom_call.1} parent=1 // pred_check_branch
      %40 = sbr.rel (0) target = $region17
    $region16: #{tpu_custom_call.1} parent=1 // pred_region
      %s42 = ssub.s32 1024, 1024
      %43 = vsyncadd [#allocation6], %s42
      %s44 = sshll.u32 [#allocation7], 4
      %s45 = int_to_ptr.vmem [resolvable:$true] %s44
      %50 = dma.hbm_to_vmem [thread:$0]  %s3, 1024, %s45, [#allocation6], 64, 64, 4
    $region17: #{tpu_custom_call.1} parent=1 // pred_fallthru
      _
    // Predicated region
    $region18: #{tpu_custom_call.1} parent=1 // pred_check
      _
    $region19: #{tpu_custom_call.1} parent=1 // pred_check_branch
      %52 = sbr.rel (0) target = $region21
    $region20: #{tpu_custom_call.1} parent=1 // pred_region
      _
    $region21: #{tpu_custom_call.1} parent=1 // pred_fallthru
      _
    // Predicated region
    $region22: #{tpu_custom_call.1} parent=1 // pred_check
      _
    $region23: #{tpu_custom_call.1} parent=1 // pred_check_branch
      %54 = sbr.rel (0) target = $region25
    $region24: #{tpu_custom_call.1} parent=1 // pred_region
      %55 = dma.done [#allocation3], 128
    $region25: #{tpu_custom_call.1} parent=1 // pred_fallthru
      _
    // Predicated region
    $region26: #{tpu_custom_call.1} parent=1 // pred_check
      _
    $region27: #{tpu_custom_call.1} parent=1 // pred_check_branch
      %57 = sbr.rel (0) target = $region29
    $region28: #{tpu_custom_call.1} parent=1 // pred_region
      %58 = dma.done [#allocation6], 1024
    $region29: #{tpu_custom_call.1} parent=1 // pred_fallthru
      _
    // Predicated region
    $region30: #{tpu_custom_call.1} parent=1 // pred_check
      _
    $region31: #{tpu_custom_call.1} parent=1 // pred_check_branch
      %60 = sbr.rel (0) target = $region33
    $region32: #{tpu_custom_call.1} parent=1 // pred_region
      %61 = dma.done [#allocation6], 1024
    $region33: #{tpu_custom_call.1} parent=1 // pred_fallthru
      _
    %v63 = vld [vmem:[%s2] sm:$0x1]
    %v64 = vld [vmem:[#allocation2] sm:$0x1]
    %v65 = vld [vmem:[#allocation2 + $0x1] sm:$0x1]
    %v66 = vld [vmem:[#allocation2 + $0x2] sm:$0x1]
    %v67 = vld [vmem:[#allocation2 + $0x3] sm:$0x1]
    %v68 = vld [vmem:[#allocation2 + $0x4] sm:$0x1]
    %v69 = vld [vmem:[#allocation2 + $0x5] sm:$0x1]
    %v70 = vld [vmem:[#allocation2 + $0x6] sm:$0x1]
    %v71 = vld [vmem:[#allocation2 + $0x7] sm:$0x1]
    %v72 = vld [vmem:[#allocation5] sm:$0xf]
    %v73 = vld [vmem:[#allocation5 + $0x4] sm:$0xf]
    %v74 = vld [vmem:[#allocation5 + $0x8] sm:$0xf]
    %v75 = vld [vmem:[#allocation5 + $0xc] sm:$0xf]
    %v76 = vld [vmem:[#allocation5 + $0x10] sm:$0xf]
    %v77 = vld [vmem:[#allocation5 + $0x14] sm:$0xf]
    %v78 = vld [vmem:[#allocation5 + $0x18] sm:$0xf]
    %v79 = vld [vmem:[#allocation5 + $0x1c] sm:$0xf]
    %v80 = vld [vmem:[#allocation5 + $0x20] sm:$0xf]
    %v81 = vld [vmem:[#allocation5 + $0x24] sm:$0xf]
    %v82 = vld [vmem:[#allocation5 + $0x28] sm:$0xf]
    %v83 = vld [vmem:[#allocation5 + $0x2c] sm:$0xf]
    %v84 = vld [vmem:[#allocation5 + $0x30] sm:$0xf]
    %v85 = vld [vmem:[#allocation5 + $0x34] sm:$0xf]
    %v86 = vld [vmem:[#allocation5 + $0x38] sm:$0xf]
    %v87 = vld [vmem:[#allocation5 + $0x3c] sm:$0xf]
    %v96 = vcombine.low %v64, %v65
    %v97 = vcombine.low %v66, %v67
    %v98 = vcombine.low %v68, %v69
    %v99 = vcombine.low %v70, %v71
    %v101 = vunpack.c.l.s4 1966171168
    %v102 = vunpack.c.0.s8 %v101
    %v103 = vlaneseq
    %v104 = vshrl.u32 %v103, 7
    %v105 = vsub.s32 %v102, %v104
    %v106 = vrot.slane %v96, %v105
    %v108 = vunpack.c.l.s4 1966171168
    %v109 = vunpack.c.0.s8 %v108
    %v110 = vlaneseq
    %v111 = vshrl.u32 %v110, 7
    %v112 = vsub.s32 %v109, %v111
    %v113 = vrot.slane %v97, %v112
    %v115 = vunpack.c.l.s4 1966171168
    %v116 = vunpack.c.0.s8 %v115
    %v117 = vlaneseq
    %v118 = vshrl.u32 %v117, 7
    %v119 = vsub.s32 %v116, %v118
    %v120 = vrot.slane %v98, %v119
    %v122 = vunpack.c.l.s4 1966171168
    %v123 = vunpack.c.0.s8 %v122
    %v124 = vlaneseq
    %v125 = vshrl.u32 %v124, 7
    %v126 = vsub.s32 %v123, %v125
    %v127 = vrot.slane %v99, %v126
    %v128 = vcombine.low %v106, %v113
    %v129 = vcombine.low %v120, %v127
    %v131 = vunpack.c.l.s4 1966171168
    %v132 = vunpack.c.0.s8 %v131
    %v133 = vlaneseq
    %v134 = vshrl.u32 %v133, 7
    %v135 = vsub.s32 %v132, %v134
    %v136 = vrot.slane %v128, %v135
    %v138 = vunpack.c.l.s4 1966171168
    %v139 = vunpack.c.0.s8 %v138
    %v140 = vlaneseq
    %v141 = vshrl.u32 %v140, 7
    %v142 = vsub.s32 %v139, %v141
    %v143 = vrot.slane %v129, %v142
    %v144 = vcombine.low %v136, %v143
    %v162 = vunpack.c.l.b16 %v72
    %v163 = vunpack.c.l.b16 %v73
    %v164 = vunpack.c.l.b16 %v74
    %v165 = vunpack.c.l.b16 %v75
    %v166 = vunpack.c.l.b16 %v76
    %v167 = vunpack.c.l.b16 %v77
    %v168 = vunpack.c.l.b16 %v78
    %v169 = vunpack.c.l.b16 %v79
    %v170 = vunpack.c.l.b16 %v80
    %v171 = vunpack.c.l.b16 %v81
    %v172 = vunpack.c.l.b16 %v82
    %v173 = vunpack.c.l.b16 %v83
    %v174 = vunpack.c.l.b16 %v84
    %v175 = vunpack.c.l.b16 %v85
    %v176 = vunpack.c.l.b16 %v86
    %v177 = vunpack.c.l.b16 %v87
    %v178 = vpack.c.b16 %v163, %v162
    %v179 = vpack.c.b16 %v165, %v164
    %v180 = vpack.c.b16 %v167, %v166
    %v181 = vpack.c.b16 %v169, %v168
    %v182 = vpack.c.b16 %v171, %v170
    %v183 = vpack.c.b16 %v173, %v172
    %v184 = vpack.c.b16 %v175, %v174
    %v185 = vpack.c.b16 %v177, %v176
    %194 = vmatprep.subr.bf16.mxu0 0
    %195 = vmatpush1.bf16.msra.mxu0 %v178
    %196 = vmatprep.subr.bf16.mxu0 0
    %197 = vmatpush1.bf16.msra.mxu0 %v179
    %198 = vmatprep.subr.bf16.mxu0 0
    %199 = vmatpush1.bf16.msra.mxu0 %v180
    %200 = vmatprep.subr.bf16.mxu0 0
    %201 = vmatpush1.bf16.msra.mxu0 %v181
    %202 = vmatprep.subr.bf16.mxu0 0
    %203 = vmatpush1.bf16.msra.mxu0 %v182
    %204 = vmatprep.subr.bf16.mxu0 0
    %205 = vmatpush1.bf16.msra.mxu0 %v183
    %206 = vmatprep.subr.bf16.mxu0 0
    %207 = vmatpush1.bf16.msra.mxu0 %v184
    %208 = vmatprep.subr.bf16.mxu0 0
    %209 = vmatpush1.bf16.msra.mxu0 %v185
    %210 = vmatprep.subr.bf16.mxu0 0
    %211 = vmatpush1.bf16.msra.mxu0 0
    %212 = vmatprep.subr.bf16.mxu0 0
    %213 = vmatpush1.bf16.msra.mxu0 0
    %214 = vmatprep.subr.bf16.mxu0 0
    %215 = vmatpush1.bf16.msra.mxu0 0
    %216 = vmatprep.subr.bf16.mxu0 0
    %217 = vmatpush1.bf16.msra.mxu0 0
    %218 = vmatprep.subr.bf16.mxu0 0
    %219 = vmatpush1.bf16.msra.mxu0 0
    %220 = vmatprep.subr.bf16.mxu0 0
    %221 = vmatpush1.bf16.msra.mxu0 0
    %222 = vmatprep.subr.bf16.mxu0 0
    %223 = vmatpush1.bf16.msra.mxu0 0
    %224 = vmatprep.subr.bf16.mxu0 0
    %225 = vmatpush1.bf16.msra.mxu0 0
    %226 = vmatprep.mubr.bf16.mxu0 0
    %227 = vmatmul.mubr.bf16.gmra.mrb[0].mxu0 %v144
    %v228 = vpop.f32.mrb[0].mxu0
    %v229 = vadd.f32 0.0, %v228
    %v230 = vpop.f32.mrb[0].mxu0
    %v231 = vpop.f32.mrb[0].mxu0
    %v232 = vadd.f32 0.0, %v231
    %v233 = vpop.f32.mrb[0].mxu0
    %234 = vdwg.mxu0
    %v236 = vlaneseq
    %v237 = vshrl.u32 %v236, 7
    %v238 = vsub.s32 0, %v237
    %v239 = vrot.slane %v63, %v238
    %v241 = vadd.f32 %v239, %v229
    %v242 = vadd.f32 %v239, %v232
    %v243 = vmax.f32 %v241, 0.0
    %v244 = vmax.f32 %v242, 0.0
    %v245 = vld [vmem:[%s4] sm:$0x1]
    %v246 = vpack.c.bf16 %v244, %v243
    %v247 = vld [vmem:[#allocation7] sm:$0xf]
    %v248 = vld [vmem:[#allocation7 + $0x4] sm:$0xf]
    %v249 = vld [vmem:[#allocation7 + $0x8] sm:$0xf]
    %v250 = vld [vmem:[#allocation7 + $0xc] sm:$0xf]
    %v251 = vld [vmem:[#allocation7 + $0x10] sm:$0xf]
    %v252 = vld [vmem:[#allocation7 + $0x14] sm:$0xf]
    %v253 = vld [vmem:[#allocation7 + $0x18] sm:$0xf]
    %v254 = vld [vmem:[#allocation7 + $0x1c] sm:$0xf]
    %v255 = vld [vmem:[#allocation7 + $0x20] sm:$0xf]
    %v256 = vld [vmem:[#allocation7 + $0x24] sm:$0xf]
    %v257 = vld [vmem:[#allocation7 + $0x28] sm:$0xf]
    %v258 = vld [vmem:[#allocation7 + $0x2c] sm:$0xf]
    %v259 = vld [vmem:[#allocation7 + $0x30] sm:$0xf]
    %v260 = vld [vmem:[#allocation7 + $0x34] sm:$0xf]
    %v261 = vld [vmem:[#allocation7 + $0x38] sm:$0xf]
    %v262 = vld [vmem:[#allocation7 + $0x3c] sm:$0xf]
    %v279 = vunpack.c.l.b16 %v247
    %v280 = vunpack.c.l.b16 %v248
    %v281 = vunpack.c.l.b16 %v249
    %v282 = vunpack.c.l.b16 %v250
    %v283 = vunpack.c.l.b16 %v251
    %v284 = vunpack.c.l.b16 %v252
    %v285 = vunpack.c.l.b16 %v253
    %v286 = vunpack.c.l.b16 %v254
    %v287 = vunpack.c.l.b16 %v255
    %v288 = vunpack.c.l.b16 %v256
    %v289 = vunpack.c.l.b16 %v257
    %v290 = vunpack.c.l.b16 %v258
    %v291 = vunpack.c.l.b16 %v259
    %v292 = vunpack.c.l.b16 %v260
    %v293 = vunpack.c.l.b16 %v261
    %v294 = vunpack.c.l.b16 %v262
    %v295 = vpack.c.b16 %v280, %v279
    %v296 = vpack.c.b16 %v282, %v281
    %v297 = vpack.c.b16 %v284, %v283
    %v298 = vpack.c.b16 %v286, %v285
    %v299 = vpack.c.b16 %v288, %v287
    %v300 = vpack.c.b16 %v290, %v289
    %v301 = vpack.c.b16 %v292, %v291
    %v302 = vpack.c.b16 %v294, %v293
    %311 = vmatprep.subr.bf16.mxu0 0
    %312 = vmatpush1.bf16.msra.mxu0 %v295
    %313 = vmatprep.subr.bf16.mxu0 0
    %314 = vmatpush1.bf16.msra.mxu0 %v296
    %315 = vmatprep.subr.bf16.mxu0 0
    %316 = vmatpush1.bf16.msra.mxu0 %v297
    %317 = vmatprep.subr.bf16.mxu0 0
    %318 = vmatpush1.bf16.msra.mxu0 %v298
    %319 = vmatprep.subr.bf16.mxu0 0
    %320 = vmatpush1.bf16.msra.mxu0 %v299
    %321 = vmatprep.subr.bf16.mxu0 0
    %322 = vmatpush1.bf16.msra.mxu0 %v300
    %323 = vmatprep.subr.bf16.mxu0 0
    %324 = vmatpush1.bf16.msra.mxu0 %v301
    %325 = vmatprep.subr.bf16.mxu0 0
    %326 = vmatpush1.bf16.msra.mxu0 %v302
    %327 = vmatprep.subr.bf16.mxu0 0
    %328 = vmatpush1.bf16.msra.mxu0 0
    %329 = vmatprep.subr.bf16.mxu0 0
    %330 = vmatpush1.bf16.msra.mxu0 0
    %331 = vmatprep.subr.bf16.mxu0 0
    %332 = vmatpush1.bf16.msra.mxu0 0
    %333 = vmatprep.subr.bf16.mxu0 0
    %334 = vmatpush1.bf16.msra.mxu0 0
    %335 = vmatprep.subr.bf16.mxu0 0
    %336 = vmatpush1.bf16.msra.mxu0 0
    %337 = vmatprep.subr.bf16.mxu0 0
    %338 = vmatpush1.bf16.msra.mxu0 0
    %339 = vmatprep.subr.bf16.mxu0 0
    %340 = vmatpush1.bf16.msra.mxu0 0
    %341 = vmatprep.subr.bf16.mxu0 0
    %342 = vmatpush1.bf16.msra.mxu0 0
    %343 = vmatprep.mubr.bf16.mxu0 0
    %344 = vmatmul.mubr.bf16.gmra.mrb[0].mxu0 %v246
    %v345 = vpop.f32.mrb[0].mxu0
    %v346 = vadd.f32 0.0, %v345
    %v347 = vpop.f32.mrb[0].mxu0
    %v348 = vpop.f32.mrb[0].mxu0
    %v349 = vadd.f32 0.0, %v348
    %v350 = vpop.f32.mrb[0].mxu0
    %351 = vdwg.mxu0
    %v353 = vlaneseq
    %v354 = vshrl.u32 %v353, 7
    %v355 = vsub.s32 0, %v354
    %v356 = vrot.slane %v245, %v355
    %v358 = vadd.f32 %v356, %v346
    %v359 = vadd.f32 %v356, %v349
    %360 = vst [vmem:[#allocation8] sm:$0xff] %v358
    %361 = vst [vmem:[#allocation8 + $0x8] sm:$0xff] %v359
    // Predicated region
    $region34: #{tpu_custom_call.1} parent=1 // pred_check
      _
    $region35: #{tpu_custom_call.1} parent=1 // pred_check_branch
      %363 = sbr.rel (0) target = $region37
    $region36: #{tpu_custom_call.1} parent=1 // pred_region
      %s365 = ssub.s32 256, 32
      %366 = vsyncadd [#allocation4], %s365
      %s367 = sshll.u32 [#allocation8], 4
      %s368 = int_to_ptr.vmem [resolvable:$true] %s367
      %373 = dma.vmem_to_hbm [thread:$0]  %s368, 32, %s5, [#allocation4], 32, 32, 2
    $region37: #{tpu_custom_call.1} parent=1 // pred_fallthru
      _
    // Predicated region
    $region38: #{tpu_custom_call.1} parent=1 // pred_check
      _
    $region39: #{tpu_custom_call.1} parent=1 // pred_check_branch
      %375 = sbr.rel (0) target = $region41
    $region40: #{tpu_custom_call.1} parent=1 // pred_region
      %376 = dma.done [#allocation4], 256
    $region41: #{tpu_custom_call.1} parent=1 // pred_fallthru
      _
    %377 = vsyncpa [#allocation3], 1
    %378 = vsyncpa [#allocation6], 1
    %379 = vsyncpa [#allocation4], 1

</llo_original>
